<compile_context>
chip_gen: v7x
topology: tpu7x:2x2x1
jax: 0.10.0
libtpu: 0.0.40
codegen_flags: <defaults>
</compile_context>

<pallas_src>
import jax
import jax.numpy as jnp
from jax import lax
from jax.experimental import pallas as pl
from jax.experimental.pallas import tpu as pltpu

_SQRT_HALF = 0.7071067811865476  # 1/sqrt(2)
_MIB = 1024 * 1024


# --------------------------- hardware queries -------------------------------

def _vmem_capacity_bytes():
    """Physical VMEM per TensorCore; conservative 64 MiB (v7x) if unknown."""
    try:
        info = pltpu.get_tpu_info()
        cap = getattr(info, "vmem_capacity_bytes", None)
        if cap:
            return int(cap)
    except Exception:
        pass
    return 64 * _MIB


def _tpu_num_cores():
    """TensorCores per chip (v7x = 2). Conservative default: 1."""
    try:
        info = pltpu.get_tpu_info()
    except Exception:
        return 1
    for name in ("num_tensorcores", "tensorcores_per_chip", "tensor_core_count",
                 "num_cores", "core_count"):
        v = getattr(info, name, None)
        if isinstance(v, int) and v > 1:
            return v
    return 1


# --------------------------- tiling heuristics -------------------------------

def _pick_tm(M, vmem_cap):
    # 128 MiB parts (v5e/v6e): 512-row token tiles amortize per-step overhead.
    # 64 MiB parts (v7x): keep 256 so x/out tiles + intermediates stay small.
    if M <= 256:
        return M
    return 512 if vmem_cap >= 96 * _MIB else 256


def _pick_th(H):
    # Hidden-dim chunk: multiple of 128 lanes that divides H (exact GELU math
    # is preserved under H-chunking). Fallback: no chunking.
    for th in (512, 256, 128):
        if H % th == 0:
            return th
    return H


def _resident_footprint(tm, D, H, th, x_bytes, o_bytes):
    weights = 2 * D * H * 2 + (H + D) * 4                  # bf16 W1+W2, f32 biases (1 copy)
    tiles = 2 * tm * D * (x_bytes + o_bytes)               # double-buffered x / out tiles
    interm = tm * D * 4 + 3 * tm * th * 4 + tm * D * 2     # acc + h/g/g_bf16 + x_bf16
    return weights + tiles + interm + 2 * _MIB             # + compiler internal slack


def _streaming_footprint(tm, D, th, x_bytes, o_bytes):
    panels = 2 * (2 * D * th * 2 + th * 4) + 2 * D * 4     # double-buffered W1/W2/b1 panels + b2
    tiles = 2 * tm * D * (x_bytes + o_bytes)
    interm = tm * D * 4 + 3 * tm * th * 4 + tm * D * 2
    return panels + tiles + interm + 2 * _MIB


def _vmem_limit(footprint, cap):
    # Computed footprint with ~40% headroom, floored at 32 MiB, never above
    # 85% of physical VMEM (matters on v7x: 64 MiB per TensorCore).
    return int(min(int(0.85 * cap), max(32 * _MIB, int(1.4 * footprint) + 4 * _MIB)))


def _gelu_exact(h):
    # Exact-erf GELU in f32 (torch.nn.functional.gelu default).
    return 0.5 * h * (1.0 + lax.erf(h * _SQRT_HALF))


# ------------------------------- kernels -------------------------------------

def _make_resident_kernel(th, n_chunks):
    """Token-tiled kernel with weights resident (single copy) in VMEM scratch."""

    def kernel(x_ref, w1_hbm, b1_hbm, w2_hbm, b2_hbm, o_ref,
               w1_v, b1_v, w2_v, b2_v, load_sem):
        # One-time weight/bias load per core chunk (single-buffered by design).
        @pl.when(pl.program_id(1) == 0)
        def _load_weights():
            copies = (
                pltpu.make_async_copy(w1_hbm, w1_v, load_sem.at[0]),
                pltpu.make_async_copy(b1_hbm, b1_v, load_sem.at[1]),
                pltpu.make_async_copy(w2_hbm, w2_v, load_sem.at[2]),
                pltpu.make_async_copy(b2_hbm, b2_v, load_sem.at[3]),
            )
            for cp in copies:
                cp.start()
            for cp in copies:
                cp.wait()

        x = x_ref[...]
        if x.dtype != jnp.bfloat16:
            x = x.astype(jnp.bfloat16)

        acc = jnp.zeros(o_ref.shape, jnp.float32)
        # H-chunked fc1 -> GELU -> fc2 accumulation: live intermediates are
        # (tm, th) instead of (tm, H); mathematically exact (GELU is
        # elementwise along H).
        for c in range(n_chunks):
            cs = c * th
            h = jnp.dot(x, w1_v[:, cs:cs + th],
                        preferred_element_type=jnp.float32)
            h = h + b1_v[:, cs:cs + th]
            g = _gelu_exact(h)
            acc = acc + jnp.dot(g.astype(jnp.bfloat16), w2_v[cs:cs + th, :],
                                preferred_element_type=jnp.float32)

        o_ref[...] = (acc + b2_v[...]).astype(o_ref.dtype)

    return kernel


def _ffn_streaming_kernel(x_ref, w1_ref, b1_ref, w2_ref, b2_ref, o_ref, acc_ref):
    """Grid-level H-tiled kernel: weight panels streamed, (tm, D) accumulator."""
    hp = pl.program_id(1)

    @pl.when(hp == 0)
    def _init():
        acc_ref[...] = jnp.zeros_like(acc_ref)

    x = x_ref[...]
    if x.dtype != jnp.bfloat16:
        x = x.astype(jnp.bfloat16)

    h = jnp.dot(x, w1_ref[...], preferred_element_type=jnp.float32) + b1_ref[...]
    g = _gelu_exact(h)
    acc_ref[...] += jnp.dot(g.astype(jnp.bfloat16), w2_ref[...],
                            preferred_element_type=jnp.float32)

    @pl.when(hp == pl.num_programs(1) - 1)
    def _finalize():
        o_ref[...] = (acc_ref[...] + b2_ref[...]).astype(o_ref.dtype)


# ---------------------------- pallas_call builders ---------------------------

def _make_resident_call(M, D, H, tm, th, x_dtype, out_dtype, cap, num_cores):
    n_chunks = max(1, H // th) if H % th == 0 else 1
    if H % th != 0:
        th = H
        n_chunks = 1

    n_tiles = pl.cdiv(M, tm)
    cores = max(1, min(num_cores, n_tiles))
    tpc = pl.cdiv(n_tiles, cores)          # token tiles per core chunk
    grid = (cores, tpc)

    if cores == 1:
        tok_index = lambda c, i: (i, 0)
        dim_sem = ("arbitrary", "arbitrary")
    else:
        last = n_tiles - 1
        tok_index = lambda c, i: (jnp.minimum(c * tpc + i, last), 0)
        core_par = getattr(pltpu, "CORE_PARALLEL", None)
        arb = getattr(pltpu, "ARBITRARY", "arbitrary")
        dim_sem = (core_par, arb) if core_par is not None else ("arbitrary", "arbitrary")

    xb = jnp.dtype(x_dtype).itemsize
    ob = jnp.dtype(out_dtype).itemsize
    footprint = _resident_footprint(tm, D, H, th, xb, ob)

    flops = 4 * M * D * H
    bytes_accessed = M * D * (xb + ob) + 2 * 2 * D * H + 4 * (H + D)

    return pl.pallas_call(
        _make_resident_kernel(th, n_chunks),
        out_shape=jax.ShapeDtypeStruct((M, D), out_dtype),
        grid_spec=pltpu.PrefetchScalarGridSpec(
            num_scalar_prefetch=0,
            grid=grid,
            in_specs=[
                pl.BlockSpec((tm, D), tok_index),        # x tile (pipelined)
                pl.BlockSpec(memory_space=pl.ANY),       # W1 (HBM, manual DMA)
                pl.BlockSpec(memory_space=pl.ANY),       # b1
                pl.BlockSpec(memory_space=pl.ANY),       # W2
                pl.BlockSpec(memory_space=pl.ANY),       # b2
            ],
            out_specs=pl.BlockSpec((tm, D), tok_index),
            scratch_shapes=[
                pltpu.VMEM((D, H), jnp.bfloat16),        # resident W1 (1 copy)
                pltpu.VMEM((1, H), jnp.float32),         # resident b1
                pltpu.VMEM((H, D), jnp.bfloat16),        # resident W2 (1 copy)
                pltpu.VMEM((1, D), jnp.float32),         # resident b2
                pltpu.SemaphoreType.DMA((4,)),
            ],
        ),
        compiler_params=pltpu.CompilerParams(
            dimension_semantics=dim_sem,
            vmem_limit_bytes=_vmem_limit(footprint, cap),
        ),
        cost_estimate=pl.CostEstimate(
            flops=flops, transcendentals=M * H, bytes_accessed=bytes_accessed),
    )


def _make_streaming_call(M, D, H, tm, th, x_dtype, out_dtype, cap, num_cores):
    # th divides H by construction of _pick_th (fallback th == H).
    n_tiles = pl.cdiv(M, tm)
    n_h = H // th

    core_par = getattr(pltpu, "CORE_PARALLEL", None)
    arb = getattr(pltpu, "ARBITRARY", "arbitrary")
    if num_cores > 1 and core_par is not None:
        dim_sem = (core_par, arb)
    else:
        dim_sem = ("parallel", "arbitrary")

    xb = jnp.dtype(x_dtype).itemsize
    ob = jnp.dtype(out_dtype).itemsize
    footprint = _streaming_footprint(tm, D, th, xb, ob)

    flops = 4 * M * D * H
    # Weight panels are re-streamed once per token tile.
    bytes_accessed = M * D * (xb + ob) + n_tiles * (2 * 2 * D * H) + 4 * (H + D)

    return pl.pallas_call(
        _ffn_streaming_kernel,
        out_shape=jax.ShapeDtypeStruct((M, D), out_dtype),
        grid_spec=pltpu.PrefetchScalarGridSpec(
            num_scalar_prefetch=0,
            grid=(n_tiles, n_h),
            in_specs=[
                pl.BlockSpec((tm, D), lambda i, h: (i, 0)),   # x tile
                pl.BlockSpec((D, th), lambda i, h: (0, h)),   # W1 panel
                pl.BlockSpec((1, th), lambda i, h: (0, h)),   # b1 panel
                pl.BlockSpec((th, D), lambda i, h: (h, 0)),   # W2 panel
                pl.BlockSpec((1, D), lambda i, h: (0, 0)),    # b2 (resident-ish)
            ],
            out_specs=pl.BlockSpec((tm, D), lambda i, h: (i, 0)),
            scratch_shapes=[pltpu.VMEM((tm, D), jnp.float32)],
        ),
        compiler_params=pltpu.CompilerParams(
            dimension_semantics=dim_sem,
            vmem_limit_bytes=_vmem_limit(footprint, cap),
        ),
        cost_estimate=pl.CostEstimate(
            flops=flops, transcendentals=M * H, bytes_accessed=bytes_accessed),
    )


# -------------------------------- wrapper ------------------------------------

def feed_forward(x, w1, b1, w2, b2, *, tm=None):
    """x: (B, S, D).  w1: (D, H), b1: (1, H), w2: (H, D), b2: (1, D)."""
    B, S, D = x.shape
    H = w1.shape[1]
    M = B * S
    x2d = x.reshape(M, D)

    cap = _vmem_capacity_bytes()
    num_cores = _tpu_num_cores()
    if tm is None:
        tm = _pick_tm(M, cap)
    tm = min(tm, M)
    th = _pick_th(H)

    # bf16 weights: halve resident VMEM / HBM traffic; matmuls accumulate in
    # f32.  Biases stay f32; GELU stays f32 exact-erf.
    w1_bf = w1.astype(jnp.bfloat16)
    w2_bf = w2.astype(jnp.bfloat16)
    b1_f32 = b1.reshape(1, H).astype(jnp.float32)
    b2_f32 = b2.reshape(1, D).astype(jnp.float32)

    xb = jnp.dtype(x.dtype).itemsize
    ob = xb  # output dtype mirrors input dtype (bf16 in -> bf16 out, no extra cast pass)

    if _resident_footprint(tm, D, H, th, xb, ob) <= int(0.80 * cap):
        call = _make_resident_call(M, D, H, tm, th, x.dtype, x.dtype, cap, num_cores)
    else:
        # Weights too large to hold resident (e.g. very large MLPs on v7x's
        # 64 MiB VMEM): stream bf16 weight panels over the hidden dimension.
        call = _make_streaming_call(M, D, H, tm, th, x.dtype, x.dtype, cap, num_cores)

    out2d = call(x2d, w1_bf, b1_f32, w2_bf, b2_f32)
    return out2d.reshape(B, S, D)


# ------------------------- params / reference / test -------------------------

def init_params(key, embed_dim, mlp_ratio):
    """Deterministic init mimicking nn.Linear default (uniform(+-1/sqrt(fan_in)))."""
    hidden = embed_dim * mlp_ratio
    k1, k2, k3, k4 = jax.random.split(key, 4)
    bound1 = 1.0 / jnp.sqrt(embed_dim)
    bound2 = 1.0 / jnp.sqrt(hidden)
    # stored already transposed: (in, out)
    w1 = jax.random.uniform(k1, (embed_dim, hidden), jnp.float32, -bound1, bound1)
    b1 = jax.random.uniform(k2, (1, hidden), jnp.float32, -bound1, bound1)
    w2 = jax.random.uniform(k3, (hidden, embed_dim), jnp.float32, -bound2, bound2)
    b2 = jax.random.uniform(k4, (1, embed_dim), jnp.float32, -bound2, bound2)
    return w1, b1, w2, b2


def reference(x, w1, b1, w2, b2, *, matmul_dtype=jnp.float32):
    """Plain-JAX reference.  matmul_dtype=bf16 mirrors the kernel's MXU path."""
    B, S, D = x.shape
    x2d = x.reshape(B * S, D)
    h = jnp.dot(x2d.astype(matmul_dtype), w1.astype(matmul_dtype),
                preferred_element_type=jnp.float32) + b1[0]
    g = _gelu_exact(h)
    z = jnp.dot(g.astype(matmul_dtype), w2.astype(matmul_dtype),
                preferred_element_type=jnp.float32) + b2[0]
    return z.reshape(B, S, D)


if __name__ == "__main__":
    # Small shapes consistent with the module: embed_dim=32, mlp_ratio=4 -> hidden=128
    B, S, D, RATIO = 2, 8, 32, 4

    key = jax.random.PRNGKey(0)
    kx, kp = jax.random.split(key)
    x = jax.random.normal(kx, (B, S, D), jnp.float32)
    w1, b1, w2, b2 = init_params(kp, D, RATIO)

    out = feed_forward(x, w1, b1, w2, b2)
    out = jax.block_until_ready(out)
    assert out.shape == (B, S, D)

    # Tight check vs a reference using the same bf16 MXU operands / f32 accum.
    ref_bf16 = reference(x, w1, b1, w2, b2, matmul_dtype=jnp.bfloat16)
    assert jnp.allclose(out, ref_bf16, atol=2e-3, rtol=2e-3), "mismatch vs bf16 reference"

    # Loose check vs the pure-f32 PyTorch-equivalent math.
    ref_f32 = reference(x, w1, b1, w2, b2, matmul_dtype=jnp.float32)
    assert jnp.allclose(out, ref_f32, atol=3e-2, rtol=3e-2), "drifted vs f32 reference"

    print("KERNEL_OK")
</pallas_src>

<mosaic_0001>
module attributes {stable_mosaic.version = 11 : i64} {
  func.func @kernel(%arg0: i32, %arg1: i32, %arg2: memref<16x32xf32, #tpu.memory_space<vmem>>, %arg3: memref<32x128xbf16, #tpu.memory_space<any>>, %arg4: memref<1x128xf32, #tpu.memory_space<any>>, %arg5: memref<128x32xbf16, #tpu.memory_space<any>>, %arg6: memref<1x32xf32, #tpu.memory_space<any>>, %arg7: memref<16x32xf32, #tpu.memory_space<vmem>>, %arg8: memref<32x128xbf16, #tpu.memory_space<vmem>>, %arg9: memref<1x128xf32, #tpu.memory_space<vmem>>, %arg10: memref<128x32xbf16, #tpu.memory_space<vmem>>, %arg11: memref<1x32xf32, #tpu.memory_space<vmem>>, %arg12: memref<4x!tpu.dma_semaphore, #tpu.memory_space<semaphore_mem>>) attributes {dimension_semantics = [#tpu.dimension_semantics<arbitrary>, #tpu.dimension_semantics<arbitrary>], iteration_bounds = array<i64: 1, 1>, scalar_prefetch = 0 : i64, scratch_operands = 5 : i64, tpu.core_type = #tpu.core_type<tc>, window_params = [{transform_indices = @transform_0, window_bounds = array<i64: 16, 32>}, {}, {}, {}, {}, {transform_indices = @transform_5, window_bounds = array<i64: 16, 32>}]} {
    %c0_i32 = arith.constant 0 : i32
    %0 = arith.cmpi eq, %arg1, %c0_i32 : i32
    %1 = arith.extui %0 : i1 to i32
    %c0_i32_0 = arith.constant 0 : i32
    %2 = arith.cmpi ne, %1, %c0_i32_0 : i32
    scf.if %2 {
      %c0_i32_17 = arith.constant 0 : i32
      %27 = tpu.memref_slice %arg12[%c0_i32_17] : memref<4x!tpu.dma_semaphore, #tpu.memory_space<semaphore_mem>> -> memref<1x!tpu.dma_semaphore, #tpu.memory_space<semaphore_mem>>
      %28 = tpu.memref_squeeze %27 : memref<1x!tpu.dma_semaphore, #tpu.memory_space<semaphore_mem>> -> memref<!tpu.dma_semaphore, #tpu.memory_space<semaphore_mem>>
      tpu.enqueue_dma source(%arg3 : memref<32x128xbf16, #tpu.memory_space<any>>) target(%arg8 : memref<32x128xbf16, #tpu.memory_space<vmem>>) target_semaphore(%28 : memref<!tpu.dma_semaphore, #tpu.memory_space<semaphore_mem>>)
      %c1_i32 = arith.constant 1 : i32
      %29 = tpu.memref_slice %arg12[%c1_i32] : memref<4x!tpu.dma_semaphore, #tpu.memory_space<semaphore_mem>> -> memref<1x!tpu.dma_semaphore, #tpu.memory_space<semaphore_mem>>
      %30 = tpu.memref_squeeze %29 : memref<1x!tpu.dma_semaphore, #tpu.memory_space<semaphore_mem>> -> memref<!tpu.dma_semaphore, #tpu.memory_space<semaphore_mem>>
      tpu.enqueue_dma source(%arg4 : memref<1x128xf32, #tpu.memory_space<any>>) target(%arg9 : memref<1x128xf32, #tpu.memory_space<vmem>>) target_semaphore(%30 : memref<!tpu.dma_semaphore, #tpu.memory_space<semaphore_mem>>)
      %c2_i32 = arith.constant 2 : i32
      %31 = tpu.memref_slice %arg12[%c2_i32] : memref<4x!tpu.dma_semaphore, #tpu.memory_space<semaphore_mem>> -> memref<1x!tpu.dma_semaphore, #tpu.memory_space<semaphore_mem>>
      %32 = tpu.memref_squeeze %31 : memref<1x!tpu.dma_semaphore, #tpu.memory_space<semaphore_mem>> -> memref<!tpu.dma_semaphore, #tpu.memory_space<semaphore_mem>>
      tpu.enqueue_dma source(%arg5 : memref<128x32xbf16, #tpu.memory_space<any>>) target(%arg10 : memref<128x32xbf16, #tpu.memory_space<vmem>>) target_semaphore(%32 : memref<!tpu.dma_semaphore, #tpu.memory_space<semaphore_mem>>)
      %c3_i32 = arith.constant 3 : i32
      %33 = tpu.memref_slice %arg12[%c3_i32] : memref<4x!tpu.dma_semaphore, #tpu.memory_space<semaphore_mem>> -> memref<1x!tpu.dma_semaphore, #tpu.memory_space<semaphore_mem>>
      %34 = tpu.memref_squeeze %33 : memref<1x!tpu.dma_semaphore, #tpu.memory_space<semaphore_mem>> -> memref<!tpu.dma_semaphore, #tpu.memory_space<semaphore_mem>>
      tpu.enqueue_dma source(%arg6 : memref<1x32xf32, #tpu.memory_space<any>>) target(%arg11 : memref<1x32xf32, #tpu.memory_space<vmem>>) target_semaphore(%34 : memref<!tpu.dma_semaphore, #tpu.memory_space<semaphore_mem>>)
      %c0_i32_18 = arith.constant 0 : i32
      %35 = tpu.memref_slice %arg12[%c0_i32_18] : memref<4x!tpu.dma_semaphore, #tpu.memory_space<semaphore_mem>> -> memref<1x!tpu.dma_semaphore, #tpu.memory_space<semaphore_mem>>
      %36 = tpu.memref_squeeze %35 : memref<1x!tpu.dma_semaphore, #tpu.memory_space<semaphore_mem>> -> memref<!tpu.dma_semaphore, #tpu.memory_space<semaphore_mem>>
      tpu.wait_dma2 semaphore(%36 : memref<!tpu.dma_semaphore, #tpu.memory_space<semaphore_mem>>) src(%arg3 : memref<32x128xbf16, #tpu.memory_space<any>>) dst(%arg8 : memref<32x128xbf16, #tpu.memory_space<vmem>>)
      %c1_i32_19 = arith.constant 1 : i32
      %37 = tpu.memref_slice %arg12[%c1_i32_19] : memref<4x!tpu.dma_semaphore, #tpu.memory_space<semaphore_mem>> -> memref<1x!tpu.dma_semaphore, #tpu.memory_space<semaphore_mem>>
      %38 = tpu.memref_squeeze %37 : memref<1x!tpu.dma_semaphore, #tpu.memory_space<semaphore_mem>> -> memref<!tpu.dma_semaphore, #tpu.memory_space<semaphore_mem>>
      tpu.wait_dma2 semaphore(%38 : memref<!tpu.dma_semaphore, #tpu.memory_space<semaphore_mem>>) src(%arg4 : memref<1x128xf32, #tpu.memory_space<any>>) dst(%arg9 : memref<1x128xf32, #tpu.memory_space<vmem>>)
      %c2_i32_20 = arith.constant 2 : i32
      %39 = tpu.memref_slice %arg12[%c2_i32_20] : memref<4x!tpu.dma_semaphore, #tpu.memory_space<semaphore_mem>> -> memref<1x!tpu.dma_semaphore, #tpu.memory_space<semaphore_mem>>
      %40 = tpu.memref_squeeze %39 : memref<1x!tpu.dma_semaphore, #tpu.memory_space<semaphore_mem>> -> memref<!tpu.dma_semaphore, #tpu.memory_space<semaphore_mem>>
      tpu.wait_dma2 semaphore(%40 : memref<!tpu.dma_semaphore, #tpu.memory_space<semaphore_mem>>) src(%arg5 : memref<128x32xbf16, #tpu.memory_space<any>>) dst(%arg10 : memref<128x32xbf16, #tpu.memory_space<vmem>>)
      %c3_i32_21 = arith.constant 3 : i32
      %41 = tpu.memref_slice %arg12[%c3_i32_21] : memref<4x!tpu.dma_semaphore, #tpu.memory_space<semaphore_mem>> -> memref<1x!tpu.dma_semaphore, #tpu.memory_space<semaphore_mem>>
      %42 = tpu.memref_squeeze %41 : memref<1x!tpu.dma_semaphore, #tpu.memory_space<semaphore_mem>> -> memref<!tpu.dma_semaphore, #tpu.memory_space<semaphore_mem>>
      tpu.wait_dma2 semaphore(%42 : memref<!tpu.dma_semaphore, #tpu.memory_space<semaphore_mem>>) src(%arg6 : memref<1x32xf32, #tpu.memory_space<any>>) dst(%arg11 : memref<1x32xf32, #tpu.memory_space<vmem>>)
    } else {
    }
    %c0 = arith.constant 0 : index
    %c0_1 = arith.constant 0 : index
    %3 = vector.load %arg2[%c0, %c0_1] : memref<16x32xf32, #tpu.memory_space<vmem>>, vector<16x32xf32>
    %4 = arith.truncf %3 : vector<16x32xf32> to vector<16x32xbf16>
    %cst = arith.constant 0.000000e+00 : f32
    %5 = vector.broadcast %cst : f32 to vector<16x32xf32>
    %c0_2 = arith.constant 0 : index
    %c0_3 = arith.constant 0 : index
    %6 = vector.load %arg8[%c0_2, %c0_3] : memref<32x128xbf16, #tpu.memory_space<vmem>>, vector<32x128xbf16>
    %cst_4 = arith.constant dense<0.000000e+00> : vector<16x128xf32>
    %7 = tpu.matmul %4, %6, %cst_4 {dimension_numbers = #tpu.dot_dimension_numbers<[1], [0], [0], [1], [0, 0, 1, 1], [], []>} : vector<16x32xbf16>, vector<32x128xbf16>, vector<16x128xf32> -> vector<16x128xf32>
    %c0_5 = arith.constant 0 : index
    %c0_6 = arith.constant 0 : index
    %8 = vector.load %arg9[%c0_5, %c0_6] : memref<1x128xf32, #tpu.memory_space<vmem>>, vector<1x128xf32>
    %9 = vector.broadcast %8 : vector<1x128xf32> to vector<16x128xf32>
    %10 = arith.addf %7, %9 : vector<16x128xf32>
    %cst_7 = arith.constant 5.000000e-01 : f32
    %11 = vector.broadcast %cst_7 : f32 to vector<16x128xf32>
    %12 = arith.mulf %11, %10 : vector<16x128xf32>
    %cst_8 = arith.constant 0.707106769 : f32
    %13 = vector.broadcast %cst_8 : f32 to vector<16x128xf32>
    %14 = arith.mulf %10, %13 : vector<16x128xf32>
    %15 = math.erf %14 : vector<16x128xf32>
    %cst_9 = arith.constant 1.000000e+00 : f32
    %16 = vector.broadcast %cst_9 : f32 to vector<16x128xf32>
    %17 = arith.addf %16, %15 : vector<16x128xf32>
    %18 = arith.mulf %12, %17 : vector<16x128xf32>
    %19 = arith.truncf %18 : vector<16x128xf32> to vector<16x128xbf16>
    %c0_10 = arith.constant 0 : index
    %c0_11 = arith.constant 0 : index
    %20 = vector.load %arg10[%c0_10, %c0_11] : memref<128x32xbf16, #tpu.memory_space<vmem>>, vector<128x32xbf16>
    %cst_12 = arith.constant dense<0.000000e+00> : vector<16x32xf32>
    %21 = tpu.matmul %19, %20, %cst_12 {dimension_numbers = #tpu.dot_dimension_numbers<[1], [0], [0], [1], [0, 0, 1, 1], [], []>} : vector<16x128xbf16>, vector<128x32xbf16>, vector<16x32xf32> -> vector<16x32xf32>
    %22 = arith.addf %5, %21 : vector<16x32xf32>
    %c0_13 = arith.constant 0 : index
    %c0_14 = arith.constant 0 : index
    %23 = vector.load %arg11[%c0_13, %c0_14] : memref<1x32xf32, #tpu.memory_space<vmem>>, vector<1x32xf32>
    %24 = vector.broadcast %23 : vector<1x32xf32> to vector<16x32xf32>
    %25 = arith.addf %22, %24 : vector<16x32xf32>
    %c0_15 = arith.constant 0 : index
    %c0_16 = arith.constant 0 : index
    %26 = vector.load %arg7[%c0_15, %c0_16] : memref<16x32xf32, #tpu.memory_space<vmem>>, vector<16x32xf32>
    tpu.vector_store %arg7[%c0_15, %c0_16], %25 {strides = array<i32>} : memref<16x32xf32, #tpu.memory_space<vmem>>, vector<16x32xf32>,
    return
  }
  func.func @transform_0(%arg0: i32, %arg1: i32) -> (i32, i32) {
    %c0_i32 = arith.constant 0 : i32
    %c0_i32_0 = arith.constant 0 : i32
    return %arg1, %c0_i32 : i32, i32
  }
  func.func @transform_5(%arg0: i32, %arg1: i32) -> (i32, i32) {
    %c0_i32 = arith.constant 0 : i32
    %c0_i32_0 = arith.constant 0 : i32
    return %arg1, %c0_i32 : i32, i32
  }
}

</mosaic_0001>

<llo_original>
// kernel: tpu_custom_call.1
$region0: #{tpu_custom_call.1}
  #allocation0 [shape = 'u32[]', space=smem, size = 0x4, offset = 0x4, fixed_abs, tag = 'smem constant byte address 0x4 - core index']
  #allocation1 [shape = 'u32[144,128]{1,0:T(1,128)}', space=vmem, size = 0x12000, scoped, tag = 'internal scratch']
  #allocation2 [shape = 'bf16[32,128]{1,0:T(16,128)(2,1)}', space=vmem, size = 0x2000, scoped, tag = 'scratch operand']
  #allocation3 [shape = 'f32[1,128]{1,0:T(1,128)}', space=vmem, size = 0x200, scoped, tag = 'scratch operand']
  #allocation4 [shape = 'bf16[128,32]{1,0:T(16,128)(2,1)}', space=vmem, size = 0x8000, scoped, tag = 'scratch operand']
  #allocation5 [shape = 'f32[1,32]{1,0:T(1,128)}', space=vmem, size = 0x200, scoped, tag = 'scratch operand']
  #allocation6 [shape = 's32[4]{0}', space=sflag, size = 0x10, scoped, tag = 'scratch operand']
  #allocation9 [shape = 's32[]', space=sflag, size = 0x4, offset = 0, fixed_abs, tag = 'sflag constant byte address 0x0 - dummy sync flag']
  #allocation10 [shape = 's32[]', space=sflag, size = 0x4, offset = 0, fixed_abs, tag = 'sflag constant byte address 0x0 - dummy sync flag']
  #allocation11 [shape = 's32[]', space=sflag, size = 0x4, offset = 0, fixed_abs, tag = 'sflag constant byte address 0x0 - dummy sync flag']
  #allocation12 [shape = 's32[]', space=sflag, size = 0x4, offset = 0, fixed_abs, tag = 'sflag constant byte address 0x0 - dummy sync flag']
  %s0 = inlined_call_operand.vmem [shape: f32[16,32], index: 0, kind: input, shape index: {}]
  %s1 = inlined_call_operand.vmem [shape: bf16[32,128], index: 1, kind: input, shape index: {}]
  %s2 = inlined_call_operand.vmem [shape: f32[1,128], index: 2, kind: input, shape index: {}]
  %s3 = inlined_call_operand.vmem [shape: bf16[128,32], index: 3, kind: input, shape index: {}]
  %s4 = inlined_call_operand.vmem [shape: f32[1,32], index: 4, kind: input, shape index: {}]
  %s5 = inlined_call_operand.hbm [shape: f32[16,32], index: 5, kind: output, shape index: {}]
  %s6 = sld [smem:[#allocation0]]
  $region146: #{tpu_custom_call.1} parent=0
    _
  %s8 = ssub.s32 1, %s6
  %s9 = scalar_select 0, %s8, %s6
  $region1: #{tpu_custom_call.1} parent=0
    #allocation7 [shape = 'u8[8192]{0}', space=vmem, size = 0x2000, scoped, tag = 'output window, operand 0, single buffered']
    #allocation8 [shape = 's32[1]{0}', space=sflag, size = 0x4, scoped, tag = 'scoped memory for tpu_custom_call.1']
    %10 = vsyncpa [#allocation8], 0
    // Predicated region
    $region2: #{tpu_custom_call.1} parent=1 // pred_check
      _
    $region3: #{tpu_custom_call.1} parent=1 // pred_check_branch
      %12 = sbr.rel (0) target = $region5
    $region4: #{tpu_custom_call.1} parent=1 // pred_region
      _
    $region5: #{tpu_custom_call.1} parent=1 // pred_fallthru
      _
    %p14 = scmp.eq.s32.totalorder 0, 0
    // Predicated region
    $region6: #{tpu_custom_call.1} parent=1 // pred_check
      %p15 = pneg %p14
    $region7: #{tpu_custom_call.1} parent=1 // pred_check_branch
      %17 = sbr.rel (%p15) target = $region9
    $region8: #{tpu_custom_call.1} parent=1 // pred_region
      %p19 = scmp.lt.u32.totalorder 16, 8
      %p20 = pneg %p19
      // Predicated region
      $region10: #{tpu_custom_call.1} parent=8 // pred_check
        _
      $region11: #{tpu_custom_call.1} parent=8 // pred_check_branch
        %22 = sbr.rel (%p19) target = $region13
      $region12: #{tpu_custom_call.1} parent=8 // pred_region
        %s37 = sand.u32 16, 7
        %p38 = scmp.eq.s32.totalorder %s37, 0
        // Predicated region
        $region25: #{tpu_custom_call.1} parent=12 // pred_check
          %p39 = pneg %p38
        $region26: #{tpu_custom_call.1} parent=12 // pred_check_branch
          %41 = sbr.rel (%p39) target = $region28
        $region27: #{tpu_custom_call.1} parent=12 // pred_region
          loop: start=0, step=1, limit=1
          $region29: #{tpu_custom_call.1} parent=27 // loop_pre_header
            _
          $region30: #{tpu_custom_call.1} parent=27 // loop_header
            %s43 = sphi 0, %s47
            %p44 = scmp.ge.s32.totalorder %s43, 1
            %s48 = sphi %s1, %s1
            %s49 = sphi [#allocation2], [#allocation2]
          $region31: #{tpu_custom_call.1} parent=27 // loop_header_branch
            %46 = sbr.rel (%p44) target = $region35
          $region32: #{tpu_custom_call.1} parent=27 // loop_body
            %v50 = vld [vmem:[%s48] sm:$0xff]
            %51 = vst [vmem:[%s49] sm:$0xff] %v50
            %v52 = vld [vmem:[%s48 + $0x8] sm:$0xff]
            %53 = vst [vmem:[%s49 + $0x8] sm:$0xff] %v52
          $region33: #{tpu_custom_call.1} parent=27 // loop_footer
            %s47 = sadd.s32 1, %s43
          $region34: #{tpu_custom_call.1} parent=27 // loop_footer_branch
            %42 = sbr.rel target = $region30
          $region35: #{tpu_custom_call.1} parent=27 // loop_exit
            _
        $region28: #{tpu_custom_call.1} parent=12 // pred_fallthru
          _
        %p54 = pneg %p38
        // Predicated region
        $region36: #{tpu_custom_call.1} parent=12 // pred_check
          _
        $region37: #{tpu_custom_call.1} parent=12 // pred_check_branch
          %56 = sbr.rel (%p38) target = $region39
        $region38: #{tpu_custom_call.1} parent=12 // pred_region
          %s57 = sand.u32 16, 7
        $region39: #{tpu_custom_call.1} parent=12 // pred_fallthru
          _
      $region13: #{tpu_custom_call.1} parent=8 // pred_fallthru
        _
      // Predicated region
      $region14: #{tpu_custom_call.1} parent=8 // pred_check
        %p23 = pneg %p19
      $region15: #{tpu_custom_call.1} parent=8 // pred_check_branch
        %25 = sbr.rel (%p23) target = $region17
      $region16: #{tpu_custom_call.1} parent=8 // pred_region
        %s26 = sshllo.u32 0, 16
        loop: start=0, step=1, limit=1
        $region18: #{tpu_custom_call.1} parent=16 // loop_pre_header
          _
        $region19: #{tpu_custom_call.1} parent=16 // loop_header
          %s28 = sphi 0, %s32
          %p29 = scmp.ge.s32.totalorder %s28, 1
          %s33 = sphi %s1, %s1
          %s34 = sphi [#allocation2], [#allocation2]
        $region20: #{tpu_custom_call.1} parent=16 // loop_header_branch
          %31 = sbr.rel (%p29) target = $region24
        $region21: #{tpu_custom_call.1} parent=16 // loop_body
          %v35 = vld [vmem:[%s33] sm:%s26]
          %36 = vst [vmem:[%s34] sm:%s26] %v35
        $region22: #{tpu_custom_call.1} parent=16 // loop_footer
          %s32 = sadd.s32 1, %s28
        $region23: #{tpu_custom_call.1} parent=16 // loop_footer_branch
          %27 = sbr.rel target = $region19
        $region24: #{tpu_custom_call.1} parent=16 // loop_exit
          _
      $region17: #{tpu_custom_call.1} parent=8 // pred_fallthru
        _
      // Predicated region
      $region40: #{tpu_custom_call.1} parent=8 // pred_check
        _
      $region41: #{tpu_custom_call.1} parent=8 // pred_check_branch
        %60 = sbr.rel (0) target = $region43
      $region42: #{tpu_custom_call.1} parent=8 // pred_region
        %61 = vsyncadd [#allocation6], 256
      $region43: #{tpu_custom_call.1} parent=8 // pred_fallthru
        _
      %s62 = scalar_lea.sflag [#allocation6], 1
      %p64 = scmp.lt.u32.totalorder 1, 8
      %p65 = pneg %p64
      // Predicated region
      $region44: #{tpu_custom_call.1} parent=8 // pred_check
        _
      $region45: #{tpu_custom_call.1} parent=8 // pred_check_branch
        %67 = sbr.rel (%p64) target = $region47
      $region46: #{tpu_custom_call.1} parent=8 // pred_region
        %s82 = sand.u32 1, 7
        %p83 = scmp.eq.s32.totalorder %s82, 0
        %p84 = pneg %p83
        // Predicated region
        $region59: #{tpu_custom_call.1} parent=46 // pred_check
          _
        $region60: #{tpu_custom_call.1} parent=46 // pred_check_branch
          %86 = sbr.rel (%p83) target = $region62
        $region61: #{tpu_custom_call.1} parent=46 // pred_region
          %s87 = sand.u32 1, 7
          %s88 = ssub.s32 1, %s87
          %s89 = scalar_lea.vmem %s2, %s88
          %s90 = ssub.s32 1, %s87
          %s91 = scalar_lea.vmem [#allocation3], %s90
          %s92 = sshllo.u32 0, %s87
          loop: start=0, step=1, limit=1
          $region63: #{tpu_custom_call.1} parent=61 // loop_pre_header
            _
          $region64: #{tpu_custom_call.1} parent=61 // loop_header
            %s94 = sphi 0, %s98
            %p95 = scmp.ge.s32.totalorder %s94, 1
            %s99 = sphi %s89, %s89
            %s100 = sphi %s91, %s91
          $region65: #{tpu_custom_call.1} parent=61 // loop_header_branch
            %97 = sbr.rel (%p95) target = $region69
          $region66: #{tpu_custom_call.1} parent=61 // loop_body
            %v101 = vld [vmem:[%s99] sm:%s92]
            %102 = vst [vmem:[%s100] sm:%s92] %v101
          $region67: #{tpu_custom_call.1} parent=61 // loop_footer
            %s98 = sadd.s32 1, %s94
          $region68: #{tpu_custom_call.1} parent=61 // loop_footer_branch
            %93 = sbr.rel target = $region64
          $region69: #{tpu_custom_call.1} parent=61 // loop_exit
            _
        $region62: #{tpu_custom_call.1} parent=46 // pred_fallthru
          _
      $region47: #{tpu_custom_call.1} parent=8 // pred_fallthru
        _
      // Predicated region
      $region48: #{tpu_custom_call.1} parent=8 // pred_check
        %p68 = pneg %p64
      $region49: #{tpu_custom_call.1} parent=8 // pred_check_branch
        %70 = sbr.rel (%p68) target = $region51
      $region50: #{tpu_custom_call.1} parent=8 // pred_region
        %s71 = sshllo.u32 0, 1
        loop: start=0, step=1, limit=1
        $region52: #{tpu_custom_call.1} parent=50 // loop_pre_header
          _
        $region53: #{tpu_custom_call.1} parent=50 // loop_header
          %s73 = sphi 0, %s77
          %p74 = scmp.ge.s32.totalorder %s73, 1
          %s78 = sphi %s2, %s2
          %s79 = sphi [#allocation3], [#allocation3]
        $region54: #{tpu_custom_call.1} parent=50 // loop_header_branch
          %76 = sbr.rel (%p74) target = $region58
        $region55: #{tpu_custom_call.1} parent=50 // loop_body
          %v80 = vld [vmem:[%s78] sm:%s71]
          %81 = vst [vmem:[%s79] sm:%s71] %v80
        $region56: #{tpu_custom_call.1} parent=50 // loop_footer
          %s77 = sadd.s32 1, %s73
        $region57: #{tpu_custom_call.1} parent=50 // loop_footer_branch
          %72 = sbr.rel target = $region53
        $region58: #{tpu_custom_call.1} parent=50 // loop_exit
          _
      $region51: #{tpu_custom_call.1} parent=8 // pred_fallthru
        _
      // Predicated region
      $region70: #{tpu_custom_call.1} parent=8 // pred_check
        _
      $region71: #{tpu_custom_call.1} parent=8 // pred_check_branch
        %105 = sbr.rel (0) target = $region73
      $region72: #{tpu_custom_call.1} parent=8 // pred_region
        %106 = vsyncadd %s62, 16
      $region73: #{tpu_custom_call.1} parent=8 // pred_fallthru
        _
      %s107 = scalar_lea.sflag [#allocation6], 2
      %p109 = scmp.lt.u32.totalorder 64, 8
      %p110 = pneg %p109
      // Predicated region
      $region74: #{tpu_custom_call.1} parent=8 // pred_check
        _
      $region75: #{tpu_custom_call.1} parent=8 // pred_check_branch
        %112 = sbr.rel (%p109) target = $region77
      $region76: #{tpu_custom_call.1} parent=8 // pred_region
        %s127 = sand.u32 64, 7
        %p128 = scmp.eq.s32.totalorder %s127, 0
        // Predicated region
        $region89: #{tpu_custom_call.1} parent=76 // pred_check
          %p129 = pneg %p128
        $region90: #{tpu_custom_call.1} parent=76 // pred_check_branch
          %131 = sbr.rel (%p129) target = $region92
        $region91: #{tpu_custom_call.1} parent=76 // pred_region
          loop: start=0, step=1, limit=1
          $region93: #{tpu_custom_call.1} parent=91 // loop_pre_header
            _
          $region94: #{tpu_custom_call.1} parent=91 // loop_header
            %s133 = sphi 0, %s137
            %p134 = scmp.ge.s32.totalorder %s133, 1
            %s138 = sphi %s3, %s3
            %s139 = sphi [#allocation4], [#allocation4]
          $region95: #{tpu_custom_call.1} parent=91 // loop_header_branch
            %136 = sbr.rel (%p134) target = $region99
          $region96: #{tpu_custom_call.1} parent=91 // loop_body
            %v140 = vld [vmem:[%s138] sm:$0xff]
            %141 = vst [vmem:[%s139] sm:$0xff] %v140
            %v142 = vld [vmem:[%s138 + $0x8] sm:$0xff]
            %143 = vst [vmem:[%s139 + $0x8] sm:$0xff] %v142
            %v144 = vld [vmem:[%s138 + $0x10] sm:$0xff]
            %145 = vst [vmem:[%s139 + $0x10] sm:$0xff] %v144
            %v146 = vld [vmem:[%s138 + $0x18] sm:$0xff]
            %147 = vst [vmem:[%s139 + $0x18] sm:$0xff] %v146
            %v148 = vld [vmem:[%s138 + $0x20] sm:$0xff]
            %149 = vst [vmem:[%s139 + $0x20] sm:$0xff] %v148
            %v150 = vld [vmem:[%s138 + $0x28] sm:$0xff]
            %151 = vst [vmem:[%s139 + $0x28] sm:$0xff] %v150
            %v152 = vld [vmem:[%s138 + $0x30] sm:$0xff]
            %153 = vst [vmem:[%s139 + $0x30] sm:$0xff] %v152
            %v154 = vld [vmem:[%s138 + $0x38] sm:$0xff]
            %155 = vst [vmem:[%s139 + $0x38] sm:$0xff] %v154
          $region97: #{tpu_custom_call.1} parent=91 // loop_footer
            %s137 = sadd.s32 1, %s133
          $region98: #{tpu_custom_call.1} parent=91 // loop_footer_branch
            %132 = sbr.rel target = $region94
          $region99: #{tpu_custom_call.1} parent=91 // loop_exit
            _
        $region92: #{tpu_custom_call.1} parent=76 // pred_fallthru
          _
        %p156 = pneg %p128
        // Predicated region
        $region100: #{tpu_custom_call.1} parent=76 // pred_check
          _
        $region101: #{tpu_custom_call.1} parent=76 // pred_check_branch
          %158 = sbr.rel (%p128) target = $region103
        $region102: #{tpu_custom_call.1} parent=76 // pred_region
          %s159 = sand.u32 64, 7
        $region103: #{tpu_custom_call.1} parent=76 // pred_fallthru
          _
      $region77: #{tpu_custom_call.1} parent=8 // pred_fallthru
        _
      // Predicated region
      $region78: #{tpu_custom_call.1} parent=8 // pred_check
        %p113 = pneg %p109
      $region79: #{tpu_custom_call.1} parent=8 // pred_check_branch
        %115 = sbr.rel (%p113) target = $region81
      $region80: #{tpu_custom_call.1} parent=8 // pred_region
        %s116 = sshllo.u32 0, 64
        loop: start=0, step=1, limit=1
        $region82: #{tpu_custom_call.1} parent=80 // loop_pre_header
          _
        $region83: #{tpu_custom_call.1} parent=80 // loop_header
          %s118 = sphi 0, %s122
          %p119 = scmp.ge.s32.totalorder %s118, 1
          %s123 = sphi %s3, %s3
          %s124 = sphi [#allocation4], [#allocation4]
        $region84: #{tpu_custom_call.1} parent=80 // loop_header_branch
          %121 = sbr.rel (%p119) target = $region88
        $region85: #{tpu_custom_call.1} parent=80 // loop_body
          %v125 = vld [vmem:[%s123] sm:%s116]
          %126 = vst [vmem:[%s124] sm:%s116] %v125
        $region86: #{tpu_custom_call.1} parent=80 // loop_footer
          %s122 = sadd.s32 1, %s118
        $region87: #{tpu_custom_call.1} parent=80 // loop_footer_branch
          %117 = sbr.rel target = $region83
        $region88: #{tpu_custom_call.1} parent=80 // loop_exit
          _
      $region81: #{tpu_custom_call.1} parent=8 // pred_fallthru
        _
      // Predicated region
      $region104: #{tpu_custom_call.1} parent=8 // pred_check
        _
      $region105: #{tpu_custom_call.1} parent=8 // pred_check_branch
        %162 = sbr.rel (0) target = $region107
      $region106: #{tpu_custom_call.1} parent=8 // pred_region
        %163 = vsyncadd %s107, 1024
      $region107: #{tpu_custom_call.1} parent=8 // pred_fallthru
        _
      %s164 = scalar_lea.sflag [#allocation6], 3
      %p166 = scmp.lt.u32.totalorder 1, 8
      %p167 = pneg %p166
      // Predicated region
      $region108: #{tpu_custom_call.1} parent=8 // pred_check
        _
      $region109: #{tpu_custom_call.1} parent=8 // pred_check_branch
        %169 = sbr.rel (%p166) target = $region111
      $region110: #{tpu_custom_call.1} parent=8 // pred_region
        %s184 = sand.u32 1, 7
        %p185 = scmp.eq.s32.totalorder %s184, 0
        %p186 = pneg %p185
        // Predicated region
        $region123: #{tpu_custom_call.1} parent=110 // pred_check
          _
        $region124: #{tpu_custom_call.1} parent=110 // pred_check_branch
          %188 = sbr.rel (%p185) target = $region126
        $region125: #{tpu_custom_call.1} parent=110 // pred_region
          %s189 = sand.u32 1, 7
          %s190 = ssub.s32 1, %s189
          %s191 = scalar_lea.vmem %s4, %s190
          %s192 = ssub.s32 1, %s189
          %s193 = scalar_lea.vmem [#allocation5], %s192
          %s194 = sshllo.u32 0, %s189
          loop: start=0, step=1, limit=1
          $region127: #{tpu_custom_call.1} parent=125 // loop_pre_header
            _
          $region128: #{tpu_custom_call.1} parent=125 // loop_header
            %s196 = sphi 0, %s200
            %p197 = scmp.ge.s32.totalorder %s196, 1
            %s201 = sphi %s191, %s191
            %s202 = sphi %s193, %s193
          $region129: #{tpu_custom_call.1} parent=125 // loop_header_branch
            %199 = sbr.rel (%p197) target = $region133
          $region130: #{tpu_custom_call.1} parent=125 // loop_body
            %v203 = vld [vmem:[%s201] sm:%s194]
            %204 = vst [vmem:[%s202] sm:%s194] %v203
          $region131: #{tpu_custom_call.1} parent=125 // loop_footer
            %s200 = sadd.s32 1, %s196
          $region132: #{tpu_custom_call.1} parent=125 // loop_footer_branch
            %195 = sbr.rel target = $region128
          $region133: #{tpu_custom_call.1} parent=125 // loop_exit
            _
        $region126: #{tpu_custom_call.1} parent=110 // pred_fallthru
          _
      $region111: #{tpu_custom_call.1} parent=8 // pred_fallthru
        _
      // Predicated region
      $region112: #{tpu_custom_call.1} parent=8 // pred_check
        %p170 = pneg %p166
      $region113: #{tpu_custom_call.1} parent=8 // pred_check_branch
        %172 = sbr.rel (%p170) target = $region115
      $region114: #{tpu_custom_call.1} parent=8 // pred_region
        %s173 = sshllo.u32 0, 1
        loop: start=0, step=1, limit=1
        $region116: #{tpu_custom_call.1} parent=114 // loop_pre_header
          _
        $region117: #{tpu_custom_call.1} parent=114 // loop_header
          %s175 = sphi 0, %s179
          %p176 = scmp.ge.s32.totalorder %s175, 1
          %s180 = sphi %s4, %s4
          %s181 = sphi [#allocation5], [#allocation5]
        $region118: #{tpu_custom_call.1} parent=114 // loop_header_branch
          %178 = sbr.rel (%p176) target = $region122
        $region119: #{tpu_custom_call.1} parent=114 // loop_body
          %v182 = vld [vmem:[%s180] sm:%s173]
          %183 = vst [vmem:[%s181] sm:%s173] %v182
        $region120: #{tpu_custom_call.1} parent=114 // loop_footer
          %s179 = sadd.s32 1, %s175
        $region121: #{tpu_custom_call.1} parent=114 // loop_footer_branch
          %174 = sbr.rel target = $region117
        $region122: #{tpu_custom_call.1} parent=114 // loop_exit
          _
      $region115: #{tpu_custom_call.1} parent=8 // pred_fallthru
        _
      // Predicated region
      $region134: #{tpu_custom_call.1} parent=8 // pred_check
        _
      $region135: #{tpu_custom_call.1} parent=8 // pred_check_branch
        %207 = sbr.rel (0) target = $region137
      $region136: #{tpu_custom_call.1} parent=8 // pred_region
        %208 = vsyncadd %s164, 16
      $region137: #{tpu_custom_call.1} parent=8 // pred_fallthru
        _
      %s209 = smul.u32 4, 4
      %s210 = smul.u32 %s209, 1
      %s211 = sshll.u32 %s210, 4
      %212 = dma.done [#allocation6], %s211
      %s213 = smul.u32 1, 1
      %s214 = sshll.u32 %s213, 4
      %215 = dma.done %s62, %s214
      %s216 = smul.u32 4, 16
      %s217 = smul.u32 %s216, 1
      %s218 = sshll.u32 %s217, 4
      %219 = dma.done %s107, %s218
      %s220 = sshll.u32 %s213, 4
      %221 = dma.done %s164, %s220
    $region9: #{tpu_custom_call.1} parent=1 // pred_fallthru
      _
    %v222 = vld [vmem:[%s0] sm:$0xff]
    %v223 = vld [vmem:[%s0 + $0x8] sm:$0xff]
    %v224 = vpack.c.bf16 %v223, %v222
    %v225 = vld [vmem:[#allocation2] sm:$0xff]
    %v226 = vld [vmem:[#allocation2 + $0x8] sm:$0xff]
    %v227 = vld [vmem:[#allocation3] sm:$0x1]
    %v229 = vlaneseq
    %v230 = vshrl.u32 %v229, 7
    %v231 = vsub.s32 0, %v230
    %v232 = vrot.slane %v227, %v231
    %vm234 = vcmask 261120
    %v236 = vsel %vm234, %v224, 0
    %238 = vmatprep.subr.bf16.mxu0 0
    %239 = vmatpush1.bf16.msra.mxu0 %v225
    %240 = vmatprep.subr.bf16.mxu0 0
    %241 = vmatpush1.bf16.msra.mxu0 %v226
    %242 = vmatprep.subr.bf16.mxu0 0
    %243 = vmatpush1.bf16.msra.mxu0 0
    %244 = vmatprep.subr.bf16.mxu0 0
    %245 = vmatpush1.bf16.msra.mxu0 0
    %246 = vmatprep.subr.bf16.mxu0 0
    %247 = vmatpush1.bf16.msra.mxu0 0
    %248 = vmatprep.subr.bf16.mxu0 0
    %249 = vmatpush1.bf16.msra.mxu0 0
    %250 = vmatprep.subr.bf16.mxu0 0
    %251 = vmatpush1.bf16.msra.mxu0 0
    %252 = vmatprep.subr.bf16.mxu0 0
    %253 = vmatpush1.bf16.msra.mxu0 0
    %254 = vmatprep.subr.bf16.mxu0 0
    %255 = vmatpush1.bf16.msra.mxu0 0
    %256 = vmatprep.subr.bf16.mxu0 0
    %257 = vmatpush1.bf16.msra.mxu0 0
    %258 = vmatprep.subr.bf16.mxu0 0
    %259 = vmatpush1.bf16.msra.mxu0 0
    %260 = vmatprep.subr.bf16.mxu0 0
    %261 = vmatpush1.bf16.msra.mxu0 0
    %262 = vmatprep.subr.bf16.mxu0 0
    %263 = vmatpush1.bf16.msra.mxu0 0
    %264 = vmatprep.subr.bf16.mxu0 0
    %265 = vmatpush1.bf16.msra.mxu0 0
    %266 = vmatprep.subr.bf16.mxu0 0
    %267 = vmatpush1.bf16.msra.mxu0 0
    %268 = vmatprep.subr.bf16.mxu0 0
    %269 = vmatpush1.bf16.msra.mxu0 0
    %270 = vmatprep.mubr.bf16.mxu0 0
    %271 = vmatmul.mubr.bf16.gmra.mrb[0].mxu0 %v236
    %v272 = vpop.f32.mrb[0].mxu0
    %v273 = vadd.f32 %v232, %v272
    %v274 = vpop.f32.mrb[0].mxu0
    %v275 = vpop.f32.mrb[0].mxu0
    %v276 = vadd.f32 %v232, %v275
    %v277 = vpop.f32.mrb[0].mxu0
    %278 = vdwg.mxu0
    %v279 = vmul.f32 %v273, 0.5
    %v280 = vmul.f32 %v276, 0.5
    %v281 = vmul.f32 %v273, 0.70710677
    %v282 = vmul.f32 %v276, 0.70710677
    %v283 = verf.f32.pop %v281
    %v284 = verf.f32.pop %v282
    %v285 = vadd.f32 %v283, 1.0
    %v286 = vadd.f32 %v284, 1.0
    %v287 = vmul.f32 %v279, %v285
    %v288 = vmul.f32 %v280, %v286
    %v289 = vpack.c.bf16 %v288, %v287
    %v290 = vld [vmem:[#allocation4] sm:$0xff]
    %v291 = vld [vmem:[#allocation4 + $0x8] sm:$0xff]
    %v292 = vld [vmem:[#allocation4 + $0x10] sm:$0xff]
    %v293 = vld [vmem:[#allocation4 + $0x18] sm:$0xff]
    %v294 = vld [vmem:[#allocation4 + $0x20] sm:$0xff]
    %v295 = vld [vmem:[#allocation4 + $0x28] sm:$0xff]
    %v296 = vld [vmem:[#allocation4 + $0x30] sm:$0xff]
    %v297 = vld [vmem:[#allocation4 + $0x38] sm:$0xff]
    %v298 = vld [vmem:[#allocation5] sm:$0x1]
    %v300 = vlaneseq
    %v301 = vshrl.u32 %v300, 7
    %v302 = vsub.s32 0, %v301
    %v303 = vrot.slane %v298, %v302
    %305 = vmatprep.subr.bf16.mxu0 0
    %306 = vmatpush1.bf16.msra.mxu0 %v290
    %307 = vmatprep.subr.bf16.mxu0 0
    %308 = vmatpush1.bf16.msra.mxu0 %v291
    %309 = vmatprep.subr.bf16.mxu0 0
    %310 = vmatpush1.bf16.msra.mxu0 %v292
    %311 = vmatprep.subr.bf16.mxu0 0
    %312 = vmatpush1.bf16.msra.mxu0 %v293
    %313 = vmatprep.subr.bf16.mxu0 0
    %314 = vmatpush1.bf16.msra.mxu0 %v294
    %315 = vmatprep.subr.bf16.mxu0 0
    %316 = vmatpush1.bf16.msra.mxu0 %v295
    %317 = vmatprep.subr.bf16.mxu0 0
    %318 = vmatpush1.bf16.msra.mxu0 %v296
    %319 = vmatprep.subr.bf16.mxu0 0
    %320 = vmatpush1.bf16.msra.mxu0 %v297
    %321 = vmatprep.subr.bf16.mxu0 0
    %322 = vmatpush1.bf16.msra.mxu0 0
    %323 = vmatprep.subr.bf16.mxu0 0
    %324 = vmatpush1.bf16.msra.mxu0 0
    %325 = vmatprep.subr.bf16.mxu0 0
    %326 = vmatpush1.bf16.msra.mxu0 0
    %327 = vmatprep.subr.bf16.mxu0 0
    %328 = vmatpush1.bf16.msra.mxu0 0
    %329 = vmatprep.subr.bf16.mxu0 0
    %330 = vmatpush1.bf16.msra.mxu0 0
    %331 = vmatprep.subr.bf16.mxu0 0
    %332 = vmatpush1.bf16.msra.mxu0 0
    %333 = vmatprep.subr.bf16.mxu0 0
    %334 = vmatpush1.bf16.msra.mxu0 0
    %335 = vmatprep.subr.bf16.mxu0 0
    %336 = vmatpush1.bf16.msra.mxu0 0
    %337 = vmatprep.mubr.bf16.mxu0 0
    %338 = vmatmul.mubr.bf16.gmra.mrb[0].mxu0 %v289
    %v339 = vpop.f32.mrb[0].mxu0
    %v340 = vadd.f32 %v303, %v339
    %v341 = vpop.f32.mrb[0].mxu0
    %v342 = vpop.f32.mrb[0].mxu0
    %v343 = vadd.f32 %v303, %v342
    %v344 = vpop.f32.mrb[0].mxu0
    %345 = vdwg.mxu0
    %346 = vst.msk [vmem:[#allocation7] sm:$0xff] %vm234, %v340
    %347 = vst.msk [vmem:[#allocation7 + $0x8] sm:$0xff] %vm234, %v343
    // Predicated region
    $region138: #{tpu_custom_call.1} parent=1 // pred_check
      _
    $region139: #{tpu_custom_call.1} parent=1 // pred_check_branch
      %349 = sbr.rel (0) target = $region141
    $region140: #{tpu_custom_call.1} parent=1 // pred_region
      %s351 = ssub.s32 256, 256
      %352 = vsyncadd [#allocation8], %s351
      %s353 = sshll.u32 [#allocation7], 4
      %s354 = int_to_ptr.vmem [resolvable:$true] %s353
      %359 = dma.vmem_to_hbm [thread:$0]  %s354, 256, %s5, [#allocation8], 128, 128, 8
    $region141: #{tpu_custom_call.1} parent=1 // pred_fallthru
      _
    // Predicated region
    $region142: #{tpu_custom_call.1} parent=1 // pred_check
      _
    $region143: #{tpu_custom_call.1} parent=1 // pred_check_branch
      %361 = sbr.rel (0) target = $region145
    $region144: #{tpu_custom_call.1} parent=1 // pred_region
      %362 = dma.done [#allocation8], 256
    $region145: #{tpu_custom_call.1} parent=1 // pred_fallthru
      _
    %363 = vsyncpa [#allocation8], 1
  %364 = vsyncmov [#allocation6]
  %s365 = vpop.sfrf %364
  %p366 = scmp.eq.s32.totalorder %s365, 0
  %p367 = pneg %p366
  %369 = shalt.err (%p367)
  %s370 = scalar_lea.sflag [#allocation6], 1
  %371 = vsyncmov %s370
  %s372 = vpop.sfrf %371
  %p373 = scmp.eq.s32.totalorder %s372, 0
  %p374 = pneg %p373
  %376 = shalt.err (%p374)
  %s377 = scalar_lea.sflag [#allocation6], 2
  %378 = vsyncmov %s377
  %s379 = vpop.sfrf %378
  %p380 = scmp.eq.s32.totalorder %s379, 0
  %p381 = pneg %p380
  %383 = shalt.err (%p381)
  %s384 = scalar_lea.sflag [#allocation6], 3
  %385 = vsyncmov %s384
  %s386 = vpop.sfrf %385
  %p387 = scmp.eq.s32.totalorder %s386, 0
  %p388 = pneg %p387
  %390 = shalt.err (%p388)

</llo_original>
